<compile_context>
chip_gen: v7x
topology: tpu7x:2x2x1
jax: 0.10.0
libtpu: 0.0.40
codegen_flags: <defaults>
</compile_context>

<pallas_src>
import math
import numpy as np

import jax
import jax.numpy as jnp
from jax.experimental import pallas as pl
from jax.experimental.pallas import tpu as pltpu


# ----------------------------- Pallas kernel --------------------------------

def _spectral_mul_kernel(a_ref, w_ref, o_ref):
    """Per (b, m-tile) complex contraction, accumulated over Cin.

    a_ref : (Cin, 2, TM)        packed [real, imag] spectrum for one batch element
    w_ref : (Cin, 2, Cout, TM)  packed [real, imag] spectral weights
    o_ref : (2, Cout, TM)       packed [real, imag] mixed spectrum
    """
    cin = a_ref.shape[0]
    o_ref[...] = jnp.zeros_like(o_ref)

    def accumulate(i):
        a_c = a_ref[i]                 # (2, TM)
        w_c = w_ref[i]                 # (2, Cout, TM)
        a_r = a_c[0:1, :]              # (1, TM)   broadcasts over Cout sublanes
        a_i = a_c[1:2, :]
        w_r = w_c[0]                   # (Cout, TM)
        w_i = w_c[1]
        # Gauss 3-multiply complex product:
        #   real = k1 - k3, imag = k1 + k2
        k1 = w_r * (a_r + a_i)
        k2 = a_r * (w_i - w_r)
        k3 = a_i * (w_r + w_i)
        o_ref[0] += k1 - k3
        o_ref[1] += k1 + k2

    if cin <= 8:
        # Short fixed trip-count: fully static unroll.
        for i in range(cin):
            accumulate(i)
    else:
        pl.loop(0, cin)(accumulate)


def _pick_tile_m(mp, cin, cout, budget_bytes=8 * 1024 * 1024):
    """Largest M-tile (multiple of 128) whose double-buffered footprint fits the budget."""
    def pad8(x):
        return ((x + 7) // 8) * 8
    for tm in (1024, 512, 256, 128):
        if mp % tm != 0:
            continue
        a_b = cin * pad8(2) * tm * 4
        w_b = cin * 2 * pad8(cout) * tm * 4
        o_b = 2 * pad8(cout) * tm * 4
        if 2 * (a_b + w_b + o_b) <= budget_bytes:
            return tm
    return 128


def spectral_mul(a_ft, weights):
    """Pallas-backed equivalent of torch.einsum('bixy,ioxy->boxy') on complex64."""
    B, Cin, kY, kX = a_ft.shape
    _, Cout, _, _ = weights.shape
    M = kY * kX
    Mp = ((M + 127) // 128) * 128          # lane-dense (multiple of 128)
    TM = _pick_tile_m(Mp, Cin, Cout)

    # Pack real/imag into one slab per operand; zero-pad the mode axis
    # (padded modes are additive-neutral, sliced off afterwards).
    ar = jnp.real(a_ft).reshape(B, Cin, M).astype(jnp.float32)
    ai = jnp.imag(a_ft).reshape(B, Cin, M).astype(jnp.float32)
    a_pk = jnp.stack([ar, ai], axis=2)                       # (B, Cin, 2, M)
    a_pk = jnp.pad(a_pk, ((0, 0), (0, 0), (0, 0), (0, Mp - M)))

    wr = jnp.real(weights).reshape(Cin, Cout, M).astype(jnp.float32)
    wi = jnp.imag(weights).reshape(Cin, Cout, M).astype(jnp.float32)
    w_pk = jnp.stack([wr, wi], axis=1)                       # (Cin, 2, Cout, M)
    w_pk = jnp.pad(w_pk, ((0, 0), (0, 0), (0, 0), (0, Mp - M)))

    grid = (Mp // TM, B)   # B innermost -> weight tile (indexed only by m) stays resident

    a_spec = pl.BlockSpec((pl.Squeezed(), Cin, 2, TM), lambda m, b: (b, 0, 0, m))
    w_spec = pl.BlockSpec((Cin, 2, Cout, TM), lambda m, b: (0, 0, 0, m))
    o_spec = pl.BlockSpec((pl.Squeezed(), 2, Cout, TM), lambda m, b: (b, 0, 0, m))

    flops = 8 * B * Cin * Cout * M
    bytes_accessed = 4 * (a_pk.size + w_pk.size + B * 2 * Cout * Mp)

    out = pl.pallas_call(
        _spectral_mul_kernel,
        out_shape=jax.ShapeDtypeStruct((B, 2, Cout, Mp), jnp.float32),
        grid=grid,
        in_specs=[a_spec, w_spec],
        out_specs=o_spec,
        compiler_params=pltpu.CompilerParams(
            dimension_semantics=("parallel", "parallel")),
        cost_estimate=pl.CostEstimate(
            flops=flops, transcendentals=0, bytes_accessed=bytes_accessed),
    )(a_pk, w_pk)

    out_c = jax.lax.complex(out[:, 0, :, :M], out[:, 1, :, :M])   # (B, Cout, M) complex64
    return out_c.reshape(B, Cout, kY, kX)


# ------------------------- Parameter construction ---------------------------

def _kaiming_uniform(key, shape, fan_in, dtype=jnp.float32):
    # torch.nn.init.kaiming_uniform_(a=sqrt(5)) bound
    a = math.sqrt(5.0)
    gain = math.sqrt(2.0 / (1.0 + a * a))
    bound = gain * math.sqrt(3.0 / fan_in)
    return jax.random.uniform(key, shape, dtype, minval=-bound, maxval=bound)


def make_spectral_weights(key, in_channels, out_channels, modes1, modes2):
    """Builds the assembled complex weight tensor (Cin, Cout, 2*modes1-1, modes2)."""
    kY = 2 * modes1 - 1
    kX = modes2
    k = jax.random.split(key, 5)

    # y0_modes: (Cin, Cout, modes1-1, 1) complex
    shp_y0 = (in_channels, out_channels, modes1 - 1, 1)
    fan_y0 = out_channels * (modes1 - 1) * 1
    y0 = jax.lax.complex(_kaiming_uniform(k[0], shp_y0, fan_y0),
                         _kaiming_uniform(k[1], shp_y0, fan_y0))

    # yposx_modes: (Cin, Cout, 2*modes1-1, modes2-1) complex
    shp_yp = (in_channels, out_channels, kY, kX - 1)
    fan_yp = out_channels * kY * (kX - 1)
    yposx = jax.lax.complex(_kaiming_uniform(k[2], shp_yp, fan_yp),
                            _kaiming_uniform(k[3], shp_yp, fan_yp))

    # 00_modes: (Cin, Cout, 1, 1) real -> cast to complex
    shp_00 = (in_channels, out_channels, 1, 1)
    fan_00 = out_channels * 1 * 1
    z00 = _kaiming_uniform(k[4], shp_00, fan_00).astype(jnp.complex64)

    # weights = cat([y0, 00, flip(y0,-2).conj()], dim=-2); cat([., yposx], dim=-1)
    col0 = jnp.concatenate(
        [y0, z00, jnp.conj(jnp.flip(y0, axis=-2))], axis=-2)        # (Cin,Cout,kY,1)
    weights = jnp.concatenate([col0, yposx], axis=-1)               # (Cin,Cout,kY,kX)
    return weights.reshape(in_channels, out_channels, kY, kX)


# ------------------------------ Forward pass ---------------------------------

class SpectralConv2d:
    def __init__(self, key, in_channels, out_channels, modes1, modes2):
        self.in_channels = in_channels
        self.out_channels = out_channels
        self.modes1 = modes1
        self.modes2 = modes2
        self.weights = make_spectral_weights(key, in_channels, out_channels,
                                             modes1, modes2)

    def __call__(self, x):
        # x: (B, Cin, H, W) float32  (NCHW, same as the PyTorch module)
        B, Cin, H, W = x.shape
        m1, m2 = self.modes1, self.modes2
        freq0_y = int(np.nonzero(np.fft.fftshift(np.fft.fftfreq(H)) == 0)[0][0])

        x_ft = jnp.fft.fftshift(jnp.fft.rfft2(x), axes=-2)          # (B,Cin,H,W//2+1)
        x_ft = x_ft[..., freq0_y - m1 + 1: freq0_y + m1, :m2]       # (B,Cin,2m1-1,m2)

        out_modes = spectral_mul(x_ft.astype(jnp.complex64),
                                 self.weights)                      # (B,Cout,2m1-1,m2)

        out_ft = jnp.zeros((B, self.out_channels, H, W // 2 + 1), dtype=jnp.complex64)
        out_ft = out_ft.at[..., freq0_y - m1 + 1: freq0_y + m1, :m2].set(out_modes)

        x_out = jnp.fft.irfft2(jnp.fft.ifftshift(out_ft, axes=-2), s=(H, W))
        return x_out.astype(jnp.float32)                            # (B,Cout,H,W)


# --------------------------------- main --------------------------------------

if __name__ == "__main__":
    key = jax.random.PRNGKey(0)
    k_x, k_w = jax.random.split(key)

    B, Cin, Cout, H, W = 2, 4, 4, 16, 16
    modes1, modes2 = 4, 4

    x = jax.random.normal(k_x, (B, Cin, H, W), dtype=jnp.float32)

    layer = SpectralConv2d(k_w, Cin, Cout, modes1, modes2)
    y = layer(x)
    y = jax.block_until_ready(y)
    assert y.shape == (B, Cout, H, W) and y.dtype == jnp.float32

    # quiet correctness check of the Pallas hot path vs. a pure-JAX einsum reference
    freq0_y = H // 2
    x_ft = jnp.fft.fftshift(jnp.fft.rfft2(x), axes=-2)
    x_ft = x_ft[..., freq0_y - modes1 + 1: freq0_y + modes1, :modes2]
    ref_modes = jnp.einsum('bixy,ioxy->boxy', x_ft.astype(jnp.complex64), layer.weights)
    got_modes = spectral_mul(x_ft.astype(jnp.complex64), layer.weights)
    np.testing.assert_allclose(np.asarray(got_modes), np.asarray(ref_modes),
                               rtol=1e-4, atol=1e-4)

    print("KERNEL_OK")
</pallas_src>

<mosaic_0001>
module attributes {stable_mosaic.version = 11 : i64} {
  func.func @_spectral_mul_kernel(%arg0: i32, %arg1: i32, %arg2: memref<1x4x2x128xf32, #tpu.memory_space<vmem>>, %arg3: memref<4x2x4x128xf32, #tpu.memory_space<vmem>>, %arg4: memref<1x2x4x128xf32, #tpu.memory_space<vmem>>) attributes {dimension_semantics = [#tpu.dimension_semantics<parallel>, #tpu.dimension_semantics<parallel>], iteration_bounds = array<i64: 1, 2>, scalar_prefetch = 0 : i64, scratch_operands = 0 : i64, tpu.core_type = #tpu.core_type<tc>, window_params = [{transform_indices = @transform_0, window_bounds = array<i64: 1, 4, 2, 128>}, {transform_indices = @transform_1, window_bounds = array<i64: 4, 2, 4, 128>}, {transform_indices = @transform_2, window_bounds = array<i64: 1, 2, 4, 128>}]} {
    %cst = arith.constant 0.000000e+00 : f32
    %0 = vector.broadcast %cst : f32 to vector<2x4x128xf32>
    %c0 = arith.constant 0 : index
    %c0_0 = arith.constant 0 : index
    %c0_1 = arith.constant 0 : index
    %c0_2 = arith.constant 0 : index
    %1 = vector.load %arg4[%c0, %c0_0, %c0_1, %c0_2] : memref<1x2x4x128xf32, #tpu.memory_space<vmem>>, vector<1x2x4x128xf32>
    %2 = vector.shape_cast %1 : vector<1x2x4x128xf32> to vector<2x4x128xf32>
    %3 = vector.shape_cast %0 : vector<2x4x128xf32> to vector<1x2x4x128xf32>
    tpu.vector_store %arg4[%c0, %c0_0, %c0_1, %c0_2], %3 {strides = array<i32>} : memref<1x2x4x128xf32, #tpu.memory_space<vmem>>, vector<1x2x4x128xf32>,
    %c0_3 = arith.constant 0 : index
    %c0_4 = arith.constant 0 : index
    %c0_5 = arith.constant 0 : index
    %c0_6 = arith.constant 0 : index
    %4 = vector.load %arg2[%c0_3, %c0_4, %c0_5, %c0_6] : memref<1x4x2x128xf32, #tpu.memory_space<vmem>>, vector<1x1x2x128xf32>
    %5 = vector.shape_cast %4 : vector<1x1x2x128xf32> to vector<2x128xf32>
    %c0_7 = arith.constant 0 : index
    %c0_8 = arith.constant 0 : index
    %c0_9 = arith.constant 0 : index
    %c0_10 = arith.constant 0 : index
    %6 = vector.load %arg3[%c0_7, %c0_8, %c0_9, %c0_10] : memref<4x2x4x128xf32, #tpu.memory_space<vmem>>, vector<1x2x4x128xf32>
    %7 = vector.shape_cast %6 : vector<1x2x4x128xf32> to vector<2x4x128xf32>
    %8 = vector.extract_strided_slice %5 {offsets = [0, 0], sizes = [1, 128], strides = [1, 1]} : vector<2x128xf32> to vector<1x128xf32>
    %9 = vector.extract_strided_slice %5 {offsets = [1, 0], sizes = [1, 128], strides = [1, 1]} : vector<2x128xf32> to vector<1x128xf32>
    %10 = vector.extract_strided_slice %7 {offsets = [0, 0, 0], sizes = [1, 4, 128], strides = [1, 1, 1]} : vector<2x4x128xf32> to vector<1x4x128xf32>
    %11 = vector.shape_cast %10 : vector<1x4x128xf32> to vector<4x128xf32>
    %12 = vector.extract_strided_slice %7 {offsets = [1, 0, 0], sizes = [1, 4, 128], strides = [1, 1, 1]} : vector<2x4x128xf32> to vector<1x4x128xf32>
    %13 = vector.shape_cast %12 : vector<1x4x128xf32> to vector<4x128xf32>
    %14 = arith.addf %8, %9 : vector<1x128xf32>
    %15 = vector.broadcast %14 : vector<1x128xf32> to vector<4x128xf32>
    %16 = arith.mulf %11, %15 : vector<4x128xf32>
    %17 = arith.subf %13, %11 : vector<4x128xf32>
    %18 = vector.broadcast %8 : vector<1x128xf32> to vector<4x128xf32>
    %19 = arith.mulf %18, %17 : vector<4x128xf32>
    %20 = arith.addf %11, %13 : vector<4x128xf32>
    %21 = vector.broadcast %9 : vector<1x128xf32> to vector<4x128xf32>
    %22 = arith.mulf %21, %20 : vector<4x128xf32>
    %c0_11 = arith.constant 0 : index
    %c0_12 = arith.constant 0 : index
    %c0_13 = arith.constant 0 : index
    %c0_14 = arith.constant 0 : index
    %23 = vector.load %arg4[%c0_11, %c0_12, %c0_13, %c0_14] : memref<1x2x4x128xf32, #tpu.memory_space<vmem>>, vector<1x1x4x128xf32>
    %24 = vector.shape_cast %23 : vector<1x1x4x128xf32> to vector<4x128xf32>
    %25 = arith.subf %16, %22 : vector<4x128xf32>
    %26 = arith.addf %24, %25 : vector<4x128xf32>
    %c0_15 = arith.constant 0 : index
    %c0_16 = arith.constant 0 : index
    %c0_17 = arith.constant 0 : index
    %c0_18 = arith.constant 0 : index
    %27 = vector.load %arg4[%c0_15, %c0_16, %c0_17, %c0_18] : memref<1x2x4x128xf32, #tpu.memory_space<vmem>>, vector<1x1x4x128xf32>
    %28 = vector.shape_cast %27 : vector<1x1x4x128xf32> to vector<4x128xf32>
    %29 = vector.shape_cast %26 : vector<4x128xf32> to vector<1x1x4x128xf32>
    tpu.vector_store %arg4[%c0_15, %c0_16, %c0_17, %c0_18], %29 {strides = array<i32>} : memref<1x2x4x128xf32, #tpu.memory_space<vmem>>, vector<1x1x4x128xf32>,
    %c0_19 = arith.constant 0 : index
    %c1 = arith.constant 1 : index
    %c0_20 = arith.constant 0 : index
    %c0_21 = arith.constant 0 : index
    %30 = vector.load %arg4[%c0_19, %c1, %c0_20, %c0_21] : memref<1x2x4x128xf32, #tpu.memory_space<vmem>>, vector<1x1x4x128xf32>
    %31 = vector.shape_cast %30 : vector<1x1x4x128xf32> to vector<4x128xf32>
    %32 = arith.addf %16, %19 : vector<4x128xf32>
    %33 = arith.addf %31, %32 : vector<4x128xf32>
    %c0_22 = arith.constant 0 : index
    %c1_23 = arith.constant 1 : index
    %c0_24 = arith.constant 0 : index
    %c0_25 = arith.constant 0 : index
    %34 = vector.load %arg4[%c0_22, %c1_23, %c0_24, %c0_25] : memref<1x2x4x128xf32, #tpu.memory_space<vmem>>, vector<1x1x4x128xf32>
    %35 = vector.shape_cast %34 : vector<1x1x4x128xf32> to vector<4x128xf32>
    %36 = vector.shape_cast %33 : vector<4x128xf32> to vector<1x1x4x128xf32>
    tpu.vector_store %arg4[%c0_22, %c1_23, %c0_24, %c0_25], %36 {strides = array<i32>} : memref<1x2x4x128xf32, #tpu.memory_space<vmem>>, vector<1x1x4x128xf32>,
    %c0_26 = arith.constant 0 : index
    %c1_27 = arith.constant 1 : index
    %c0_28 = arith.constant 0 : index
    %c0_29 = arith.constant 0 : index
    %37 = vector.load %arg2[%c0_26, %c1_27, %c0_28, %c0_29] : memref<1x4x2x128xf32, #tpu.memory_space<vmem>>, vector<1x1x2x128xf32>
    %38 = vector.shape_cast %37 : vector<1x1x2x128xf32> to vector<2x128xf32>
    %c1_30 = arith.constant 1 : index
    %c0_31 = arith.constant 0 : index
    %c0_32 = arith.constant 0 : index
    %c0_33 = arith.constant 0 : index
    %39 = vector.load %arg3[%c1_30, %c0_31, %c0_32, %c0_33] : memref<4x2x4x128xf32, #tpu.memory_space<vmem>>, vector<1x2x4x128xf32>
    %40 = vector.shape_cast %39 : vector<1x2x4x128xf32> to vector<2x4x128xf32>
    %41 = vector.extract_strided_slice %38 {offsets = [0, 0], sizes = [1, 128], strides = [1, 1]} : vector<2x128xf32> to vector<1x128xf32>
    %42 = vector.extract_strided_slice %38 {offsets = [1, 0], sizes = [1, 128], strides = [1, 1]} : vector<2x128xf32> to vector<1x128xf32>
    %43 = vector.extract_strided_slice %40 {offsets = [0, 0, 0], sizes = [1, 4, 128], strides = [1, 1, 1]} : vector<2x4x128xf32> to vector<1x4x128xf32>
    %44 = vector.shape_cast %43 : vector<1x4x128xf32> to vector<4x128xf32>
    %45 = vector.extract_strided_slice %40 {offsets = [1, 0, 0], sizes = [1, 4, 128], strides = [1, 1, 1]} : vector<2x4x128xf32> to vector<1x4x128xf32>
    %46 = vector.shape_cast %45 : vector<1x4x128xf32> to vector<4x128xf32>
    %47 = arith.addf %41, %42 : vector<1x128xf32>
    %48 = vector.broadcast %47 : vector<1x128xf32> to vector<4x128xf32>
    %49 = arith.mulf %44, %48 : vector<4x128xf32>
    %50 = arith.subf %46, %44 : vector<4x128xf32>
    %51 = vector.broadcast %41 : vector<1x128xf32> to vector<4x128xf32>
    %52 = arith.mulf %51, %50 : vector<4x128xf32>
    %53 = arith.addf %44, %46 : vector<4x128xf32>
    %54 = vector.broadcast %42 : vector<1x128xf32> to vector<4x128xf32>
    %55 = arith.mulf %54, %53 : vector<4x128xf32>
    %c0_34 = arith.constant 0 : index
    %c0_35 = arith.constant 0 : index
    %c0_36 = arith.constant 0 : index
    %c0_37 = arith.constant 0 : index
    %56 = vector.load %arg4[%c0_34, %c0_35, %c0_36, %c0_37] : memref<1x2x4x128xf32, #tpu.memory_space<vmem>>, vector<1x1x4x128xf32>
    %57 = vector.shape_cast %56 : vector<1x1x4x128xf32> to vector<4x128xf32>
    %58 = arith.subf %49, %55 : vector<4x128xf32>
    %59 = arith.addf %57, %58 : vector<4x128xf32>
    %c0_38 = arith.constant 0 : index
    %c0_39 = arith.constant 0 : index
    %c0_40 = arith.constant 0 : index
    %c0_41 = arith.constant 0 : index
    %60 = vector.load %arg4[%c0_38, %c0_39, %c0_40, %c0_41] : memref<1x2x4x128xf32, #tpu.memory_space<vmem>>, vector<1x1x4x128xf32>
    %61 = vector.shape_cast %60 : vector<1x1x4x128xf32> to vector<4x128xf32>
    %62 = vector.shape_cast %59 : vector<4x128xf32> to vector<1x1x4x128xf32>
    tpu.vector_store %arg4[%c0_38, %c0_39, %c0_40, %c0_41], %62 {strides = array<i32>} : memref<1x2x4x128xf32, #tpu.memory_space<vmem>>, vector<1x1x4x128xf32>,
    %c0_42 = arith.constant 0 : index
    %c1_43 = arith.constant 1 : index
    %c0_44 = arith.constant 0 : index
    %c0_45 = arith.constant 0 : index
    %63 = vector.load %arg4[%c0_42, %c1_43, %c0_44, %c0_45] : memref<1x2x4x128xf32, #tpu.memory_space<vmem>>, vector<1x1x4x128xf32>
    %64 = vector.shape_cast %63 : vector<1x1x4x128xf32> to vector<4x128xf32>
    %65 = arith.addf %49, %52 : vector<4x128xf32>
    %66 = arith.addf %64, %65 : vector<4x128xf32>
    %c0_46 = arith.constant 0 : index
    %c1_47 = arith.constant 1 : index
    %c0_48 = arith.constant 0 : index
    %c0_49 = arith.constant 0 : index
    %67 = vector.load %arg4[%c0_46, %c1_47, %c0_48, %c0_49] : memref<1x2x4x128xf32, #tpu.memory_space<vmem>>, vector<1x1x4x128xf32>
    %68 = vector.shape_cast %67 : vector<1x1x4x128xf32> to vector<4x128xf32>
    %69 = vector.shape_cast %66 : vector<4x128xf32> to vector<1x1x4x128xf32>
    tpu.vector_store %arg4[%c0_46, %c1_47, %c0_48, %c0_49], %69 {strides = array<i32>} : memref<1x2x4x128xf32, #tpu.memory_space<vmem>>, vector<1x1x4x128xf32>,
    %c0_50 = arith.constant 0 : index
    %c2 = arith.constant 2 : index
    %c0_51 = arith.constant 0 : index
    %c0_52 = arith.constant 0 : index
    %70 = vector.load %arg2[%c0_50, %c2, %c0_51, %c0_52] : memref<1x4x2x128xf32, #tpu.memory_space<vmem>>, vector<1x1x2x128xf32>
    %71 = vector.shape_cast %70 : vector<1x1x2x128xf32> to vector<2x128xf32>
    %c2_53 = arith.constant 2 : index
    %c0_54 = arith.constant 0 : index
    %c0_55 = arith.constant 0 : index
    %c0_56 = arith.constant 0 : index
    %72 = vector.load %arg3[%c2_53, %c0_54, %c0_55, %c0_56] : memref<4x2x4x128xf32, #tpu.memory_space<vmem>>, vector<1x2x4x128xf32>
    %73 = vector.shape_cast %72 : vector<1x2x4x128xf32> to vector<2x4x128xf32>
    %74 = vector.extract_strided_slice %71 {offsets = [0, 0], sizes = [1, 128], strides = [1, 1]} : vector<2x128xf32> to vector<1x128xf32>
    %75 = vector.extract_strided_slice %71 {offsets = [1, 0], sizes = [1, 128], strides = [1, 1]} : vector<2x128xf32> to vector<1x128xf32>
    %76 = vector.extract_strided_slice %73 {offsets = [0, 0, 0], sizes = [1, 4, 128], strides = [1, 1, 1]} : vector<2x4x128xf32> to vector<1x4x128xf32>
    %77 = vector.shape_cast %76 : vector<1x4x128xf32> to vector<4x128xf32>
    %78 = vector.extract_strided_slice %73 {offsets = [1, 0, 0], sizes = [1, 4, 128], strides = [1, 1, 1]} : vector<2x4x128xf32> to vector<1x4x128xf32>
    %79 = vector.shape_cast %78 : vector<1x4x128xf32> to vector<4x128xf32>
    %80 = arith.addf %74, %75 : vector<1x128xf32>
    %81 = vector.broadcast %80 : vector<1x128xf32> to vector<4x128xf32>
    %82 = arith.mulf %77, %81 : vector<4x128xf32>
    %83 = arith.subf %79, %77 : vector<4x128xf32>
    %84 = vector.broadcast %74 : vector<1x128xf32> to vector<4x128xf32>
    %85 = arith.mulf %84, %83 : vector<4x128xf32>
    %86 = arith.addf %77, %79 : vector<4x128xf32>
    %87 = vector.broadcast %75 : vector<1x128xf32> to vector<4x128xf32>
    %88 = arith.mulf %87, %86 : vector<4x128xf32>
    %c0_57 = arith.constant 0 : index
    %c0_58 = arith.constant 0 : index
    %c0_59 = arith.constant 0 : index
    %c0_60 = arith.constant 0 : index
    %89 = vector.load %arg4[%c0_57, %c0_58, %c0_59, %c0_60] : memref<1x2x4x128xf32, #tpu.memory_space<vmem>>, vector<1x1x4x128xf32>
    %90 = vector.shape_cast %89 : vector<1x1x4x128xf32> to vector<4x128xf32>
    %91 = arith.subf %82, %88 : vector<4x128xf32>
    %92 = arith.addf %90, %91 : vector<4x128xf32>
    %c0_61 = arith.constant 0 : index
    %c0_62 = arith.constant 0 : index
    %c0_63 = arith.constant 0 : index
    %c0_64 = arith.constant 0 : index
    %93 = vector.load %arg4[%c0_61, %c0_62, %c0_63, %c0_64] : memref<1x2x4x128xf32, #tpu.memory_space<vmem>>, vector<1x1x4x128xf32>
    %94 = vector.shape_cast %93 : vector<1x1x4x128xf32> to vector<4x128xf32>
    %95 = vector.shape_cast %92 : vector<4x128xf32> to vector<1x1x4x128xf32>
    tpu.vector_store %arg4[%c0_61, %c0_62, %c0_63, %c0_64], %95 {strides = array<i32>} : memref<1x2x4x128xf32, #tpu.memory_space<vmem>>, vector<1x1x4x128xf32>,
    %c0_65 = arith.constant 0 : index
    %c1_66 = arith.constant 1 : index
    %c0_67 = arith.constant 0 : index
    %c0_68 = arith.constant 0 : index
    %96 = vector.load %arg4[%c0_65, %c1_66, %c0_67, %c0_68] : memref<1x2x4x128xf32, #tpu.memory_space<vmem>>, vector<1x1x4x128xf32>
    %97 = vector.shape_cast %96 : vector<1x1x4x128xf32> to vector<4x128xf32>
    %98 = arith.addf %82, %85 : vector<4x128xf32>
    %99 = arith.addf %97, %98 : vector<4x128xf32>
    %c0_69 = arith.constant 0 : index
    %c1_70 = arith.constant 1 : index
    %c0_71 = arith.constant 0 : index
    %c0_72 = arith.constant 0 : index
    %100 = vector.load %arg4[%c0_69, %c1_70, %c0_71, %c0_72] : memref<1x2x4x128xf32, #tpu.memory_space<vmem>>, vector<1x1x4x128xf32>
    %101 = vector.shape_cast %100 : vector<1x1x4x128xf32> to vector<4x128xf32>
    %102 = vector.shape_cast %99 : vector<4x128xf32> to vector<1x1x4x128xf32>
    tpu.vector_store %arg4[%c0_69, %c1_70, %c0_71, %c0_72], %102 {strides = array<i32>} : memref<1x2x4x128xf32, #tpu.memory_space<vmem>>, vector<1x1x4x128xf32>,
    %c0_73 = arith.constant 0 : index
    %c3 = arith.constant 3 : index
    %c0_74 = arith.constant 0 : index
    %c0_75 = arith.constant 0 : index
    %103 = vector.load %arg2[%c0_73, %c3, %c0_74, %c0_75] : memref<1x4x2x128xf32, #tpu.memory_space<vmem>>, vector<1x1x2x128xf32>
    %104 = vector.shape_cast %103 : vector<1x1x2x128xf32> to vector<2x128xf32>
    %c3_76 = arith.constant 3 : index
    %c0_77 = arith.constant 0 : index
    %c0_78 = arith.constant 0 : index
    %c0_79 = arith.constant 0 : index
    %105 = vector.load %arg3[%c3_76, %c0_77, %c0_78, %c0_79] : memref<4x2x4x128xf32, #tpu.memory_space<vmem>>, vector<1x2x4x128xf32>
    %106 = vector.shape_cast %105 : vector<1x2x4x128xf32> to vector<2x4x128xf32>
    %107 = vector.extract_strided_slice %104 {offsets = [0, 0], sizes = [1, 128], strides = [1, 1]} : vector<2x128xf32> to vector<1x128xf32>
    %108 = vector.extract_strided_slice %104 {offsets = [1, 0], sizes = [1, 128], strides = [1, 1]} : vector<2x128xf32> to vector<1x128xf32>
    %109 = vector.extract_strided_slice %106 {offsets = [0, 0, 0], sizes = [1, 4, 128], strides = [1, 1, 1]} : vector<2x4x128xf32> to vector<1x4x128xf32>
    %110 = vector.shape_cast %109 : vector<1x4x128xf32> to vector<4x128xf32>
    %111 = vector.extract_strided_slice %106 {offsets = [1, 0, 0], sizes = [1, 4, 128], strides = [1, 1, 1]} : vector<2x4x128xf32> to vector<1x4x128xf32>
    %112 = vector.shape_cast %111 : vector<1x4x128xf32> to vector<4x128xf32>
    %113 = arith.addf %107, %108 : vector<1x128xf32>
    %114 = vector.broadcast %113 : vector<1x128xf32> to vector<4x128xf32>
    %115 = arith.mulf %110, %114 : vector<4x128xf32>
    %116 = arith.subf %112, %110 : vector<4x128xf32>
    %117 = vector.broadcast %107 : vector<1x128xf32> to vector<4x128xf32>
    %118 = arith.mulf %117, %116 : vector<4x128xf32>
    %119 = arith.addf %110, %112 : vector<4x128xf32>
    %120 = vector.broadcast %108 : vector<1x128xf32> to vector<4x128xf32>
    %121 = arith.mulf %120, %119 : vector<4x128xf32>
    %c0_80 = arith.constant 0 : index
    %c0_81 = arith.constant 0 : index
    %c0_82 = arith.constant 0 : index
    %c0_83 = arith.constant 0 : index
    %122 = vector.load %arg4[%c0_80, %c0_81, %c0_82, %c0_83] : memref<1x2x4x128xf32, #tpu.memory_space<vmem>>, vector<1x1x4x128xf32>
    %123 = vector.shape_cast %122 : vector<1x1x4x128xf32> to vector<4x128xf32>
    %124 = arith.subf %115, %121 : vector<4x128xf32>
    %125 = arith.addf %123, %124 : vector<4x128xf32>
    %c0_84 = arith.constant 0 : index
    %c0_85 = arith.constant 0 : index
    %c0_86 = arith.constant 0 : index
    %c0_87 = arith.constant 0 : index
    %126 = vector.load %arg4[%c0_84, %c0_85, %c0_86, %c0_87] : memref<1x2x4x128xf32, #tpu.memory_space<vmem>>, vector<1x1x4x128xf32>
    %127 = vector.shape_cast %126 : vector<1x1x4x128xf32> to vector<4x128xf32>
    %128 = vector.shape_cast %125 : vector<4x128xf32> to vector<1x1x4x128xf32>
    tpu.vector_store %arg4[%c0_84, %c0_85, %c0_86, %c0_87], %128 {strides = array<i32>} : memref<1x2x4x128xf32, #tpu.memory_space<vmem>>, vector<1x1x4x128xf32>,
    %c0_88 = arith.constant 0 : index
    %c1_89 = arith.constant 1 : index
    %c0_90 = arith.constant 0 : index
    %c0_91 = arith.constant 0 : index
    %129 = vector.load %arg4[%c0_88, %c1_89, %c0_90, %c0_91] : memref<1x2x4x128xf32, #tpu.memory_space<vmem>>, vector<1x1x4x128xf32>
    %130 = vector.shape_cast %129 : vector<1x1x4x128xf32> to vector<4x128xf32>
    %131 = arith.addf %115, %118 : vector<4x128xf32>
    %132 = arith.addf %130, %131 : vector<4x128xf32>
    %c0_92 = arith.constant 0 : index
    %c1_93 = arith.constant 1 : index
    %c0_94 = arith.constant 0 : index
    %c0_95 = arith.constant 0 : index
    %133 = vector.load %arg4[%c0_92, %c1_93, %c0_94, %c0_95] : memref<1x2x4x128xf32, #tpu.memory_space<vmem>>, vector<1x1x4x128xf32>
    %134 = vector.shape_cast %133 : vector<1x1x4x128xf32> to vector<4x128xf32>
    %135 = vector.shape_cast %132 : vector<4x128xf32> to vector<1x1x4x128xf32>
    tpu.vector_store %arg4[%c0_92, %c1_93, %c0_94, %c0_95], %135 {strides = array<i32>} : memref<1x2x4x128xf32, #tpu.memory_space<vmem>>, vector<1x1x4x128xf32>,
    return
  }
  func.func @transform_0(%arg0: i32, %arg1: i32) -> (i32, i32, i32, i32) {
    %c0_i32 = arith.constant 0 : i32
    %c0_i32_0 = arith.constant 0 : i32
    %c0_i32_1 = arith.constant 0 : i32
    return %arg1, %c0_i32, %c0_i32_0, %arg0 : i32, i32, i32, i32
  }
  func.func @transform_1(%arg0: i32, %arg1: i32) -> (i32, i32, i32, i32) {
    %c0_i32 = arith.constant 0 : i32
    %c0_i32_0 = arith.constant 0 : i32
    %c0_i32_1 = arith.constant 0 : i32
    %c0_i32_2 = arith.constant 0 : i32
    return %c0_i32, %c0_i32_0, %c0_i32_1, %arg0 : i32, i32, i32, i32
  }
  func.func @transform_2(%arg0: i32, %arg1: i32) -> (i32, i32, i32, i32) {
    %c0_i32 = arith.constant 0 : i32
    %c0_i32_0 = arith.constant 0 : i32
    %c0_i32_1 = arith.constant 0 : i32
    return %arg1, %c0_i32, %c0_i32_0, %arg0 : i32, i32, i32, i32
  }
}

</mosaic_0001>

<llo_original>
// kernel: tpu_custom_call.1
$region0: #{tpu_custom_call.1}
  #allocation0 [shape = 'u32[]', space=smem, size = 0x4, offset = 0x4, fixed_abs, tag = 'smem constant byte address 0x4 - core index']
  #allocation1 [shape = 'u32[144,128]{1,0:T(1,128)}', space=vmem, size = 0x12000, scoped, tag = 'internal scratch']
  %s0 = inlined_call_operand.hbm [shape: f32[2,4,2,128], index: 0, kind: input, shape index: {}]
  %s1 = inlined_call_operand.hbm [shape: f32[4,2,4,128], index: 1, kind: input, shape index: {}]
  %s2 = inlined_call_operand.hbm [shape: f32[2,2,4,128], index: 2, kind: output, shape index: {}]
  %s3 = sld [smem:[#allocation0]]
  $region49: #{tpu_custom_call.1} parent=0
    _
  %s5 = ssub.s32 1, %s3
  %s6 = scalar_select 0, %s5, %s3
  $region1: #{tpu_custom_call.1} parent=0
    #allocation2 [shape = 'u8[8192]{0}', space=vmem, size = 0x2000, scoped, tag = 'input window, operand 0']
    #allocation3 [shape = 's32[2]{0}', space=sflag, size = 0x8, scoped, tag = 'scoped memory for tpu_custom_call.1']
    #allocation4 [shape = 's32[2]{0}', space=sflag, size = 0x8, scoped, tag = 'scoped memory for tpu_custom_call.1']
    #allocation5 [shape = 'u8[16384]{0}', space=vmem, size = 0x4000, scoped, tag = 'input window, operand 1, single buffered']
    #allocation6 [shape = 's32[1]{0}', space=sflag, size = 0x4, scoped, tag = 'scoped memory for tpu_custom_call.1']
    #allocation7 [shape = 'u8[8192]{0}', space=vmem, size = 0x2000, scoped, tag = 'output window, operand 0']
    %7 = vsyncpa [#allocation3], 0
    %s8 = scalar_lea.sflag [#allocation3], 1
    %9 = vsyncpa %s8, 0
    %10 = vsyncpa [#allocation6], 0
    %11 = vsyncpa [#allocation4], 0
    %s12 = scalar_lea.sflag [#allocation4], 1
    %13 = vsyncpa %s12, 0
    loop: start=0, step=1, limit=4
    $region2: #{tpu_custom_call.1} parent=1 // loop_pre_header
      _
    $region3: #{tpu_custom_call.1} parent=1 // loop_header
      %s15 = sphi 0, %s19
      %p16 = scmp.ge.s32.totalorder %s15, 4
      %s22 = sphi 0, %s34
      %s23 = sphi 0, %s30
      %s24 = sphi 0, %s22
      %s25 = sphi 0, %s23
      %s26 = sphi 0, %s24
      %s27 = sphi 0, %s25
      %s39 = sphi 0, %s41
      %s42 = sphi 0, %s39
      %s43 = sphi 0, %s42
      %s59 = sphi 0, %s43
      %s65 = sphi 0, %s67
      %s68 = sphi 0, %s65
      %s69 = sphi 0, %s68
      %s85 = sphi 0, %s69
      %s93 = sphi 0, %s95
      %s96 = sphi 0, %s93
      %s97 = sphi 0, %s96
      %s113 = sphi 0, %s97
    $region4: #{tpu_custom_call.1} parent=1 // loop_header_branch
      %18 = sbr.rel (%p16) target = $region8
    $region5: #{tpu_custom_call.1} parent=1 // loop_body
      %s20 = ssub.s32 %s15, 1
      %s21 = ssub.s32 %s15, 2
      %s28 = sadd.s32 1, %s23
      %p29 = scmp.ge.s32.totalorder %s28, 2
      %s30 = scalar_select %p29, 0, %s28
      %s31 = sadd.s32 1, %s22
      %s32 = scalar_select %p29, %s31, %s22
      %p33 = scmp.ge.s32.totalorder %s32, 1
      %s34 = scalar_select %p33, 0, %s32
      %s35 = ssub.s32 %s23, %s30
      %s36 = ssub.s32 %s22, %s34
      %s37 = sor.u32 %s35, %s36
      %p38 = scmp.eq.s32.totalorder %s37, 0
      %s40 = sadd.s32 %s39, 1
      %s41 = scalar_select %p38, %s39, %s40
      %p44 = pneg %p38
      %p45 = scmp.eq.s32.totalorder %s15, 1
      %p46 = por %p44, %p45
      %p47 = scmp.ne.s32.totalorder %s39, %s42
      %p48 = scmp.eq.s32.totalorder %s15, 0
      %p49 = por %p47, %p48
      %p50 = scmp.ne.s32.totalorder %s39, %s42
      %p51 = scmp.eq.s32.totalorder %s20, 1
      %p52 = por %p50, %p51
      %p53 = scmp.ne.s32.totalorder %s42, %s43
      %p54 = scmp.eq.s32.totalorder %s20, 0
      %p55 = por %p53, %p54
      %p56 = scmp.ne.s32.totalorder %s42, %s43
      %p57 = scmp.eq.s32.totalorder %s21, 1
      %p58 = por %p56, %p57
      %p60 = scmp.ne.s32.totalorder %s43, %s59
      %p61 = scmp.eq.s32.totalorder %s21, 0
      %p62 = por %p60, %p61
      %s63 = ssub.s32 %s22, %s34
      %p64 = scmp.eq.s32.totalorder %s63, 0
      %s66 = sadd.s32 %s65, 1
      %s67 = scalar_select %p64, %s65, %s66
      %p70 = pneg %p64
      %p71 = scmp.eq.s32.totalorder %s15, 1
      %p72 = por %p70, %p71
      %p73 = scmp.ne.s32.totalorder %s65, %s68
      %p74 = scmp.eq.s32.totalorder %s15, 0
      %p75 = por %p73, %p74
      %p76 = scmp.ne.s32.totalorder %s65, %s68
      %p77 = scmp.eq.s32.totalorder %s20, 1
      %p78 = por %p76, %p77
      %p79 = scmp.ne.s32.totalorder %s68, %s69
      %p80 = scmp.eq.s32.totalorder %s20, 0
      %p81 = por %p79, %p80
      %p82 = scmp.ne.s32.totalorder %s68, %s69
      %p83 = scmp.eq.s32.totalorder %s21, 1
      %p84 = por %p82, %p83
      %p86 = scmp.ne.s32.totalorder %s69, %s85
      %p87 = scmp.eq.s32.totalorder %s21, 0
      %p88 = por %p86, %p87
      %s89 = ssub.s32 %s23, %s30
      %s90 = ssub.s32 %s22, %s34
      %s91 = sor.u32 %s89, %s90
      %p92 = scmp.eq.s32.totalorder %s91, 0
      %s94 = sadd.s32 %s93, 1
      %s95 = scalar_select %p92, %s93, %s94
      %p98 = pneg %p92
      %p99 = scmp.eq.s32.totalorder %s15, 1
      %p100 = por %p98, %p99
      %p101 = scmp.ne.s32.totalorder %s93, %s96
      %p102 = scmp.eq.s32.totalorder %s15, 0
      %p103 = por %p101, %p102
      %p104 = scmp.ne.s32.totalorder %s93, %s96
      %p105 = scmp.eq.s32.totalorder %s20, 1
      %p106 = por %p104, %p105
      %p107 = scmp.ne.s32.totalorder %s96, %s97
      %p108 = scmp.eq.s32.totalorder %s20, 0
      %p109 = por %p107, %p108
      %p110 = scmp.ne.s32.totalorder %s96, %s97
      %p111 = scmp.eq.s32.totalorder %s21, 1
      %p112 = por %p110, %p111
      %p114 = scmp.ne.s32.totalorder %s97, %s113
      %p115 = scmp.eq.s32.totalorder %s21, 0
      %p116 = por %p114, %p115
      %p117 = scmp.le.s32.totalorder 1, %s15
      %p118 = scmp.lt.s32.totalorder %s15, 3
      %p119 = pnand %p117, %p118
      %p120 = pneg %p119
      // Predicated region
      $region9: #{tpu_custom_call.1} parent=5 // pred_check
        _
      $region10: #{tpu_custom_call.1} parent=5 // pred_check_branch
        %122 = sbr.rel (%p119) target = $region12
      $region11: #{tpu_custom_call.1} parent=5 // pred_region
        %s123 = ssub.s32 %s15, 1
        // Predicated region
        $region13: #{tpu_custom_call.1} parent=11 // pred_check
          %p124 = pneg %p81
        $region14: #{tpu_custom_call.1} parent=11 // pred_check_branch
          %126 = sbr.rel (%p124) target = $region16
        $region15: #{tpu_custom_call.1} parent=11 // pred_region
          %s128 = ssub.s32 512, 512
          %129 = vsyncadd [#allocation6], %s128
          %s130 = smul.addr %s24, 64
          %s131 = scalar_lea.hbm %s1, %s130
          %s132 = sshll.u32 [#allocation5], 4
          %s133 = int_to_ptr.vmem [resolvable:$true] %s132
          %138 = dma.hbm_to_vmem [thread:$0]  %s131, 512, %s133, [#allocation6], 64, 64, 4
        $region16: #{tpu_custom_call.1} parent=11 // pred_fallthru
          _
      $region12: #{tpu_custom_call.1} parent=5 // pred_fallthru
        _
      %p139 = scmp.lt.s32.totalorder %s15, 2
      // Predicated region
      $region17: #{tpu_custom_call.1} parent=5 // pred_check
        %p140 = pneg %p139
      $region18: #{tpu_custom_call.1} parent=5 // pred_check_branch
        %142 = sbr.rel (%p140) target = $region20
      $region19: #{tpu_custom_call.1} parent=5 // pred_region
        // Predicated region
        $region21: #{tpu_custom_call.1} parent=19 // pred_check
          %p143 = pneg %p49
        $region22: #{tpu_custom_call.1} parent=19 // pred_check_branch
          %145 = sbr.rel (%p143) target = $region24
        $region23: #{tpu_custom_call.1} parent=19 // pred_region
          %s146 = sand.u32 %s39, 1
          %s147 = scalar_lea.sflag [#allocation3], %s146
          %s148 = sand.u32 %s39, 1
          %s149 = smul.addr %s148, 8
          %s150 = scalar_lea.vmem [#allocation2], %s149
          %s152 = ssub.s32 128, 128
          %153 = vsyncadd %s147, %s152
          %s154 = smul.addr %s23, 4
          %s155 = sadd.s32 %s22, %s154
          %s156 = smul.addr %s155, 32
          %s157 = scalar_lea.hbm %s0, %s156
          %s158 = sshll.u32 %s150, 4
          %s159 = int_to_ptr.vmem [resolvable:$true] %s158
          %164 = dma.hbm_to_vmem [thread:$0]  %s157, 128, %s159, %s147, 32, 32, 2
        $region24: #{tpu_custom_call.1} parent=19 // pred_fallthru
          _
      $region20: #{tpu_custom_call.1} parent=5 // pred_fallthru
        _
      %p165 = scmp.le.s32.totalorder 1, %s15
      %p166 = scmp.lt.s32.totalorder %s15, 3
      %p167 = pnand %p165, %p166
      %p168 = pneg %p167
      // Predicated region
      $region25: #{tpu_custom_call.1} parent=5 // pred_check
        _
      $region26: #{tpu_custom_call.1} parent=5 // pred_check_branch
        %170 = sbr.rel (%p167) target = $region28
      $region27: #{tpu_custom_call.1} parent=5 // pred_region
        %s171 = ssub.s32 %s15, 1
        %s172 = sand.u32 %s42, 1
        %s173 = scalar_lea.sflag [#allocation3], %s172
        %s174 = sand.u32 %s42, 1
        %s175 = smul.addr %s174, 8
        %s176 = scalar_lea.vmem [#allocation2], %s175
        // Predicated region
        $region29: #{tpu_custom_call.1} parent=27 // pred_check
          %p177 = pneg %p55
        $region30: #{tpu_custom_call.1} parent=27 // pred_check_branch
          %179 = sbr.rel (%p177) target = $region32
        $region31: #{tpu_custom_call.1} parent=27 // pred_region
          %180 = dma.done %s173, 128
        $region32: #{tpu_custom_call.1} parent=27 // pred_fallthru
          _
        // Predicated region
        $region33: #{tpu_custom_call.1} parent=27 // pred_check
          %p181 = pneg %p81
        $region34: #{tpu_custom_call.1} parent=27 // pred_check_branch
          %183 = sbr.rel (%p181) target = $region36
        $region35: #{tpu_custom_call.1} parent=27 // pred_region
          %184 = dma.done [#allocation6], 512
        $region36: #{tpu_custom_call.1} parent=27 // pred_fallthru
          _
        %s185 = sand.u32 %s42, 1
        %s186 = scalar_lea.sflag [#allocation3], %s185
        %s187 = sand.u32 %s42, 1
        %s188 = smul.addr %s187, 8
        %s189 = scalar_lea.vmem [#allocation2], %s188
        %p190 = pneg %p55
        %p191 = pneg %p52
        %p192 = pneg %p81
        %p193 = pneg %p78
        %p194 = pneg %p109
        %p195 = pneg %p106
        %s196 = sand.u32 %s96, 1
        %s197 = scalar_lea.sflag [#allocation4], %s196
        %s198 = sand.u32 %s96, 1
        %s199 = smul.addr %s198, 8
        %s200 = scalar_lea.vmem [#allocation7], %s199
        %201 = vst [vmem:[%s200] sm:$0xf] 0.0
        %202 = vst [vmem:[%s200 + $0x4] sm:$0xf] 0.0
        %v203 = vld [vmem:[%s176] sm:$0x3]
        %v204 = vld [vmem:[#allocation5] sm:$0xf]
        %v205 = vld [vmem:[#allocation5 + $0x4] sm:$0xf]
        %v207 = vrot.slane %v203, 1
        %v209 = vadd.f32 %v203, %v207
        %v210 = vlaneseq
        %v211 = vshrl.u32 %v210, 7
        %v212 = vsub.s32 0, %v211
        %v213 = vrot.slane %v209, %v212
        %v214 = vmul.f32 %v204, %v213
        %v215 = vsub.f32 %v205, %v204
        %v216 = vlaneseq
        %v217 = vshrl.u32 %v216, 7
        %v218 = vsub.s32 0, %v217
        %v219 = vrot.slane %v203, %v218
        %v220 = vmul.f32 %v219, %v215
        %v221 = vadd.f32 %v204, %v205
        %v222 = vlaneseq
        %v223 = vshrl.u32 %v222, 7
        %v224 = vsub.s32 1, %v223
        %v225 = vrot.slane %v203, %v224
        %v226 = vmul.f32 %v225, %v221
        %v227 = vld [vmem:[%s200] sm:$0xf]
        %v228 = vsub.f32 %v214, %v226
        %v229 = vadd.f32 %v227, %v228
        %230 = vst [vmem:[%s200] sm:$0xf] %v229
        %s231 = scalar_lea.vmem %s200, 4 [#allocation7]
        %v232 = vld [vmem:[%s231] sm:$0xf]
        %v233 = vadd.f32 %v214, %v220
        %v234 = vadd.f32 %v232, %v233
        %235 = vst [vmem:[%s231] sm:$0xf] %v234
        %s236 = scalar_lea.vmem %s176, 2 [#allocation2]
        %v237 = vld [vmem:[%s236] sm:$0x3]
        %s238 = scalar_lea.vmem [#allocation5], 8
        %v239 = vld [vmem:[%s238] sm:$0xf]
        %v240 = vld [vmem:[%s238 + $0x4] sm:$0xf]
        %v242 = vrot.slane %v237, 1
        %v244 = vadd.f32 %v237, %v242
        %v245 = vlaneseq
        %v246 = vshrl.u32 %v245, 7
        %v247 = vsub.s32 0, %v246
        %v248 = vrot.slane %v244, %v247
        %v249 = vmul.f32 %v239, %v248
        %v250 = vsub.f32 %v240, %v239
        %v251 = vlaneseq
        %v252 = vshrl.u32 %v251, 7
        %v253 = vsub.s32 0, %v252
        %v254 = vrot.slane %v237, %v253
        %v255 = vmul.f32 %v254, %v250
        %v256 = vadd.f32 %v239, %v240
        %v257 = vlaneseq
        %v258 = vshrl.u32 %v257, 7
        %v259 = vsub.s32 1, %v258
        %v260 = vrot.slane %v237, %v259
        %v261 = vmul.f32 %v260, %v256
        %v262 = vld [vmem:[%s200] sm:$0xf]
        %v263 = vsub.f32 %v249, %v261
        %v264 = vadd.f32 %v262, %v263
        %265 = vst [vmem:[%s200] sm:$0xf] %v264
        %v266 = vld [vmem:[%s231] sm:$0xf]
        %v267 = vadd.f32 %v249, %v255
        %v268 = vadd.f32 %v266, %v267
        %269 = vst [vmem:[%s231] sm:$0xf] %v268
        %s270 = scalar_lea.vmem %s176, 4 [#allocation2]
        %v271 = vld [vmem:[%s270] sm:$0x3]
        %s272 = scalar_lea.vmem [#allocation5], 16
        %v273 = vld [vmem:[%s272] sm:$0xf]
        %v274 = vld [vmem:[%s272 + $0x4] sm:$0xf]
        %v276 = vrot.slane %v271, 1
        %v278 = vadd.f32 %v271, %v276
        %v279 = vlaneseq
        %v280 = vshrl.u32 %v279, 7
        %v281 = vsub.s32 0, %v280
        %v282 = vrot.slane %v278, %v281
        %v283 = vmul.f32 %v273, %v282
        %v284 = vsub.f32 %v274, %v273
        %v285 = vlaneseq
        %v286 = vshrl.u32 %v285, 7
        %v287 = vsub.s32 0, %v286
        %v288 = vrot.slane %v271, %v287
        %v289 = vmul.f32 %v288, %v284
        %v290 = vadd.f32 %v273, %v274
        %v291 = vlaneseq
        %v292 = vshrl.u32 %v291, 7
        %v293 = vsub.s32 1, %v292
        %v294 = vrot.slane %v271, %v293
        %v295 = vmul.f32 %v294, %v290
        %v296 = vld [vmem:[%s200] sm:$0xf]
        %v297 = vsub.f32 %v283, %v295
        %v298 = vadd.f32 %v296, %v297
        %299 = vst [vmem:[%s200] sm:$0xf] %v298
        %v300 = vld [vmem:[%s231] sm:$0xf]
        %v301 = vadd.f32 %v283, %v289
        %v302 = vadd.f32 %v300, %v301
        %303 = vst [vmem:[%s231] sm:$0xf] %v302
        %s304 = scalar_lea.vmem %s176, 6 [#allocation2]
        %v305 = vld [vmem:[%s304] sm:$0x3]
        %s306 = scalar_lea.vmem [#allocation5], 24
        %v307 = vld [vmem:[%s306] sm:$0xf]
        %v308 = vld [vmem:[%s306 + $0x4] sm:$0xf]
        %v310 = vrot.slane %v305, 1
        %v312 = vadd.f32 %v305, %v310
        %v313 = vlaneseq
        %v314 = vshrl.u32 %v313, 7
        %v315 = vsub.s32 0, %v314
        %v316 = vrot.slane %v312, %v315
        %v317 = vmul.f32 %v307, %v316
        %v318 = vsub.f32 %v308, %v307
        %v319 = vlaneseq
        %v320 = vshrl.u32 %v319, 7
        %v321 = vsub.s32 0, %v320
        %v322 = vrot.slane %v305, %v321
        %v323 = vmul.f32 %v322, %v318
        %v324 = vadd.f32 %v307, %v308
        %v325 = vlaneseq
        %v326 = vshrl.u32 %v325, 7
        %v327 = vsub.s32 1, %v326
        %v328 = vrot.slane %v305, %v327
        %v329 = vmul.f32 %v328, %v324
        %v330 = vld [vmem:[%s200] sm:$0xf]
        %v331 = vsub.f32 %v317, %v329
        %v332 = vadd.f32 %v330, %v331
        %333 = vst [vmem:[%s200] sm:$0xf] %v332
        %v334 = vld [vmem:[%s231] sm:$0xf]
        %v335 = vadd.f32 %v317, %v323
        %v336 = vadd.f32 %v334, %v335
        %337 = vst [vmem:[%s231] sm:$0xf] %v336
        %s338 = sand.u32 %s96, 1
        %s339 = scalar_lea.sflag [#allocation4], %s338
        %s340 = sand.u32 %s96, 1
        %s341 = smul.addr %s340, 8
        %s342 = scalar_lea.vmem [#allocation7], %s341
        // Predicated region
        $region37: #{tpu_custom_call.1} parent=27 // pred_check
          %p343 = pneg %p106
        $region38: #{tpu_custom_call.1} parent=27 // pred_check_branch
          %345 = sbr.rel (%p343) target = $region40
        $region39: #{tpu_custom_call.1} parent=27 // pred_region
          %s347 = ssub.s32 128, 128
          %348 = vsyncadd %s339, %s347
          %s349 = smul.addr %s25, 2
          %s350 = sadd.s32 %s24, %s349
          %s351 = smul.addr %s350, 64
          %s352 = scalar_lea.hbm %s2, %s351
          %s353 = sshll.u32 %s342, 4
          %s354 = int_to_ptr.vmem [resolvable:$true] %s353
          %359 = dma.vmem_to_hbm [thread:$0]  %s354, 128, %s352, %s339, 64, 64, 4
        $region40: #{tpu_custom_call.1} parent=27 // pred_fallthru
          _
      $region28: #{tpu_custom_call.1} parent=5 // pred_fallthru
        _
      %p360 = scmp.le.s32.totalorder 2, %s15
      // Predicated region
      $region41: #{tpu_custom_call.1} parent=5 // pred_check
        %p361 = pneg %p360
      $region42: #{tpu_custom_call.1} parent=5 // pred_check_branch
        %363 = sbr.rel (%p361) target = $region44
      $region43: #{tpu_custom_call.1} parent=5 // pred_region
        %s364 = ssub.s32 %s15, 2
        // Predicated region
        $region45: #{tpu_custom_call.1} parent=43 // pred_check
          %p365 = pneg %p112
        $region46: #{tpu_custom_call.1} parent=43 // pred_check_branch
          %367 = sbr.rel (%p365) target = $region48
        $region47: #{tpu_custom_call.1} parent=43 // pred_region
          %s368 = sand.u32 %s97, 1
          %s369 = scalar_lea.sflag [#allocation4], %s368
          %s370 = sand.u32 %s97, 1
          %s371 = smul.addr %s370, 8
          %s372 = scalar_lea.vmem [#allocation7], %s371
          %373 = dma.done %s369, 128
        $region48: #{tpu_custom_call.1} parent=43 // pred_fallthru
          _
      $region44: #{tpu_custom_call.1} parent=5 // pred_fallthru
        _
    $region6: #{tpu_custom_call.1} parent=1 // loop_footer
      %s19 = sadd.s32 1, %s15
    $region7: #{tpu_custom_call.1} parent=1 // loop_footer_branch
      %14 = sbr.rel target = $region3
    $region8: #{tpu_custom_call.1} parent=1 // loop_exit
      _
    %374 = vsyncpa [#allocation3], 1
    %s375 = scalar_lea.sflag [#allocation3], 1
    %376 = vsyncpa %s375, 1
    %377 = vsyncpa [#allocation6], 1
    %378 = vsyncpa [#allocation4], 1
    %s379 = scalar_lea.sflag [#allocation4], 1
    %380 = vsyncpa %s379, 1

</llo_original>
